<compile_context>
chip_gen: v5e
topology: v5e:2x2
jax: 0.10.0
libtpu: 0.0.40
codegen_flags: <defaults>
</compile_context>

<pallas_src>
import functools

import jax
import jax.numpy as jnp
from jax.experimental import pallas as pl
from jax.experimental.pallas import tpu as pltpu


def _qvals(x, w, b):
    """f32 Q-values via static VPU unroll over the (tiny) state dim."""
    s_dim = x.shape[1]
    acc = x[:, 0:1] * w[0:1, :]
    for s in range(1, s_dim):                    # static unroll (S is tiny)
        acc = acc + x[:, s:s + 1] * w[s:s + 1, :]
    return acc + b                               # (B, A) + (1, A) broadcast


# ---------------------------------------------------------------------------
# Inference path: gridless, everything in VMEM, fused greedy-action argmax.
# ---------------------------------------------------------------------------
def _qnet_act_kernel(x_ref, w_ref, b_ref, q_ref, a_ref):
    q = _qvals(x_ref[...], w_ref[...], b_ref[...])           # f32 (B, A)
    q_ref[...] = q.astype(q_ref.dtype)

    # argmax over the action dim with first-max tie-break, expressed with
    # max / where / min lane-axis reductions (all cheap at A lanes).
    q_max = jnp.max(q, axis=-1, keepdims=True)
    col = jax.lax.broadcasted_iota(jnp.int32, q.shape, 1)
    big = jnp.iinfo(jnp.int32).max
    masked = jnp.where(q >= q_max, col, big)
    a_ref[...] = jnp.min(masked, axis=-1, keepdims=True).astype(a_ref.dtype)


@jax.jit
def simple_q_network(x, w_t, b):
    """Returns (q_values, greedy_action).

    q_values == x @ w_t + b  (torch nn.Linear forward semantics)
    greedy_action == argmax(q_values, axis=-1), shape (B, 1) int32.
    """
    B, _ = x.shape
    A = w_t.shape[1]
    vmem = pl.BlockSpec(memory_space=pltpu.MemorySpace.VMEM)
    q, action = pl.pallas_call(
        _qnet_act_kernel,
        out_shape=(jax.ShapeDtypeStruct((B, A), x.dtype),
                   jax.ShapeDtypeStruct((B, 1), jnp.int32)),
        in_specs=[vmem, vmem, vmem],
        out_specs=(vmem, vmem),
    )(x, w_t, b)
    return q, action


# ---------------------------------------------------------------------------
# Gridless Q-value-only kernel (small batches / single env step).
# ---------------------------------------------------------------------------
def _qnet_kernel(x_ref, w_ref, b_ref, q_ref):
    q_ref[...] = _qvals(x_ref[...], w_ref[...], b_ref[...]).astype(q_ref.dtype)


def _qnet_gridless(x, w_t, b):
    B, _ = x.shape
    A = w_t.shape[1]
    vmem = pl.BlockSpec(memory_space=pltpu.MemorySpace.VMEM)
    return pl.pallas_call(
        _qnet_kernel,
        out_shape=jax.ShapeDtypeStruct((B, A), x.dtype),
        in_specs=[vmem, vmem, vmem],
        out_specs=vmem,
    )(x, w_t, b)


# ---------------------------------------------------------------------------
# Training path: batch-tiled grid; weight/bias blocks stay resident (same
# block index every grid step). Batch axis marked "parallel" (2-TC on v7x).
# ---------------------------------------------------------------------------
@functools.partial(jax.jit, static_argnames=("tb",))
def simple_q_network_batched(x, w_t, b, *, tb=512):
    B, S = x.shape
    A = w_t.shape[1]
    # For small batches a grid buys nothing but per-step overhead: go gridless.
    if B <= tb:
        return _qnet_gridless(x, w_t, b)
    return pl.pallas_call(
        _qnet_kernel,
        out_shape=jax.ShapeDtypeStruct((B, A), x.dtype),
        grid=(pl.cdiv(B, tb),),
        in_specs=[
            pl.BlockSpec((tb, S), lambda i: (i, 0)),
            pl.BlockSpec((S, A), lambda i: (0, 0)),
            pl.BlockSpec((1, A), lambda i: (0, 0)),
        ],
        out_specs=pl.BlockSpec((tb, A), lambda i: (i, 0)),
        compiler_params=pltpu.CompilerParams(
            dimension_semantics=("parallel",)),
    )(x, w_t, b)


def init_params(key, state_size, action_size):
    # torch.nn.Linear default init: U(-1/sqrt(in), 1/sqrt(in)).
    kw, kb = jax.random.split(key)
    bound = 1.0 / jnp.sqrt(jnp.float32(state_size))
    w = jax.random.uniform(
        kw, (action_size, state_size), jnp.float32, -bound, bound)  # (out, in)
    b = jax.random.uniform(kb, (action_size,), jnp.float32, -bound, bound)
    return w, b


if __name__ == "__main__":
    state_size = 4     # CartPole observation dim
    action_size = 2    # CartPole action dim
    batch = 8

    key = jax.random.PRNGKey(0)
    kx, kp, kbig = jax.random.split(key, 3)
    x = jax.random.normal(kx, (batch, state_size), jnp.float32)
    w, b = init_params(kp, state_size, action_size)

    w_t = w.T                           # (S, A)
    b2 = b.reshape(1, action_size)      # (1, A)

    # --- inference path (gridless, fused argmax) ---
    q, action = simple_q_network(x, w_t, b2)
    jax.block_until_ready((q, action))

    ref_q = x @ w.T + b
    ref_a = jnp.argmax(ref_q, axis=-1).astype(jnp.int32)
    assert q.shape == (batch, action_size)
    assert action.shape == (batch, 1)
    assert jnp.allclose(q, ref_q, atol=1e-5, rtol=1e-5)
    assert jnp.array_equal(action[:, 0], ref_a)

    # --- training path: small batch (gridless fallback) ---
    q_small = simple_q_network_batched(x, w_t, b2)
    jax.block_until_ready(q_small)
    assert jnp.allclose(q_small, ref_q, atol=1e-5, rtol=1e-5)

    # --- training path: larger batch (batch-tiled grid) ---
    big_batch = 1024
    x_big = jax.random.normal(kbig, (big_batch, state_size), jnp.float32)
    q_big = simple_q_network_batched(x_big, w_t, b2, tb=512)
    jax.block_until_ready(q_big)
    ref_big = x_big @ w.T + b
    assert q_big.shape == (big_batch, action_size)
    assert jnp.allclose(q_big, ref_big, atol=1e-5, rtol=1e-5)

    print("KERNEL_OK")
</pallas_src>

<mosaic_0001>
module attributes {stable_mosaic.version = 11 : i64} {
  func.func @_qnet_act_kernel(%arg0: memref<8x4xf32, #tpu.memory_space<vmem>>, %arg1: memref<4x2xf32, #tpu.memory_space<vmem>>, %arg2: memref<1x2xf32, #tpu.memory_space<vmem>>, %arg3: memref<8x2xf32, #tpu.memory_space<vmem>>, %arg4: memref<8x1xi32, #tpu.memory_space<vmem>>) attributes {dimension_semantics = [], scalar_prefetch = 0 : i64, scratch_operands = 0 : i64, tpu.core_type = #tpu.core_type<tc>} {
    %c0 = arith.constant 0 : index
    %c0_0 = arith.constant 0 : index
    %0 = vector.load %arg0[%c0, %c0_0] : memref<8x4xf32, #tpu.memory_space<vmem>>, vector<8x4xf32>
    %c0_1 = arith.constant 0 : index
    %c0_2 = arith.constant 0 : index
    %1 = vector.load %arg1[%c0_1, %c0_2] : memref<4x2xf32, #tpu.memory_space<vmem>>, vector<4x2xf32>
    %c0_3 = arith.constant 0 : index
    %c0_4 = arith.constant 0 : index
    %2 = vector.load %arg2[%c0_3, %c0_4] : memref<1x2xf32, #tpu.memory_space<vmem>>, vector<1x2xf32>
    %3 = vector.extract_strided_slice %0 {offsets = [0, 0], sizes = [8, 1], strides = [1, 1]} : vector<8x4xf32> to vector<8x1xf32>
    %4 = vector.extract_strided_slice %1 {offsets = [0, 0], sizes = [1, 2], strides = [1, 1]} : vector<4x2xf32> to vector<1x2xf32>
    %5 = vector.broadcast %3 : vector<8x1xf32> to vector<8x2xf32>
    %6 = vector.broadcast %4 : vector<1x2xf32> to vector<8x2xf32>
    %7 = arith.mulf %5, %6 : vector<8x2xf32>
    %8 = vector.extract_strided_slice %0 {offsets = [0, 1], sizes = [8, 1], strides = [1, 1]} : vector<8x4xf32> to vector<8x1xf32>
    %9 = vector.extract_strided_slice %1 {offsets = [1, 0], sizes = [1, 2], strides = [1, 1]} : vector<4x2xf32> to vector<1x2xf32>
    %10 = vector.broadcast %8 : vector<8x1xf32> to vector<8x2xf32>
    %11 = vector.broadcast %9 : vector<1x2xf32> to vector<8x2xf32>
    %12 = arith.mulf %10, %11 : vector<8x2xf32>
    %13 = arith.addf %7, %12 : vector<8x2xf32>
    %14 = vector.extract_strided_slice %0 {offsets = [0, 2], sizes = [8, 1], strides = [1, 1]} : vector<8x4xf32> to vector<8x1xf32>
    %15 = vector.extract_strided_slice %1 {offsets = [2, 0], sizes = [1, 2], strides = [1, 1]} : vector<4x2xf32> to vector<1x2xf32>
    %16 = vector.broadcast %14 : vector<8x1xf32> to vector<8x2xf32>
    %17 = vector.broadcast %15 : vector<1x2xf32> to vector<8x2xf32>
    %18 = arith.mulf %16, %17 : vector<8x2xf32>
    %19 = arith.addf %13, %18 : vector<8x2xf32>
    %20 = vector.extract_strided_slice %0 {offsets = [0, 3], sizes = [8, 1], strides = [1, 1]} : vector<8x4xf32> to vector<8x1xf32>
    %21 = vector.extract_strided_slice %1 {offsets = [3, 0], sizes = [1, 2], strides = [1, 1]} : vector<4x2xf32> to vector<1x2xf32>
    %22 = vector.broadcast %20 : vector<8x1xf32> to vector<8x2xf32>
    %23 = vector.broadcast %21 : vector<1x2xf32> to vector<8x2xf32>
    %24 = arith.mulf %22, %23 : vector<8x2xf32>
    %25 = arith.addf %19, %24 : vector<8x2xf32>
    %26 = vector.broadcast %2 : vector<1x2xf32> to vector<8x2xf32>
    %27 = arith.addf %25, %26 : vector<8x2xf32>
    %c0_5 = arith.constant 0 : index
    %c0_6 = arith.constant 0 : index
    %28 = vector.load %arg3[%c0_5, %c0_6] : memref<8x2xf32, #tpu.memory_space<vmem>>, vector<8x2xf32>
    tpu.vector_store %arg3[%c0_5, %c0_6], %27 {strides = array<i32>} : memref<8x2xf32, #tpu.memory_space<vmem>>, vector<8x2xf32>,
    %cst = arith.constant dense<0xFF800000> : vector<8xf32>
    %29 = vector.multi_reduction <maximumf>, %27, %cst [1] : vector<8x2xf32> to vector<8xf32>
    %30 = vector.shape_cast %29 : vector<8xf32> to vector<8x1xf32>
    %31 = tpu.iota {dimensions = array<i32: 1>} : vector<8x2xi32>
    %32 = vector.broadcast %30 : vector<8x1xf32> to vector<8x2xf32>
    %33 = arith.cmpf oge, %27, %32 : vector<8x2xf32>
    %c2147483647_i32 = arith.constant 2147483647 : i32
    %34 = vector.broadcast %c2147483647_i32 : i32 to vector<8x2xi32>
    %35 = arith.select %33, %31, %34 : vector<8x2xi1>, vector<8x2xi32>
    %cst_7 = arith.constant dense<2147483647> : vector<8xi32>
    %36 = vector.multi_reduction <minsi>, %35, %cst_7 [1] : vector<8x2xi32> to vector<8xi32>
    %37 = vector.shape_cast %36 : vector<8xi32> to vector<8x1xi32>
    %c0_8 = arith.constant 0 : index
    %c0_9 = arith.constant 0 : index
    %38 = vector.load %arg4[%c0_8, %c0_9] : memref<8x1xi32, #tpu.memory_space<vmem>>, vector<8x1xi32>
    tpu.vector_store %arg4[%c0_8, %c0_9], %37 {strides = array<i32>} : memref<8x1xi32, #tpu.memory_space<vmem>>, vector<8x1xi32>,
    return
  }
}

</mosaic_0001>

<llo_original>
// kernel: simple_q_network.1
$region0: #{simple_q_network.1}
  #allocation0 [shape = 'u32[]', space=smem, size = 0x4, offset = 0x4, fixed_abs, tag = 'smem constant byte address 0x4 - core index']
  #allocation1 [shape = 'u32[72,128]{1,0:T(1,128)}', space=vmem, size = 0x9000, scoped, tag = 'internal scratch']
  %s0 = inlined_call_operand.vmem [shape: f32[8,4], index: 0, kind: input, shape index: {}]
  %s1 = inlined_call_operand.vmem [shape: f32[4,2], index: 1, kind: input, shape index: {}]
  %s2 = inlined_call_operand.vmem [shape: f32[1,2], index: 2, kind: input, shape index: {}]
  %s3 = inlined_call_operand.vmem [shape: f32[8,2], index: 3, kind: output, shape index: {0}]
  %s4 = inlined_call_operand.vmem [shape: s32[8,1], index: 4, kind: output, shape index: {1}]
  %5 = xla_tuple %s3, %s4
  %s6 = sld [smem:[#allocation0]]
  $region30: #{simple_q_network.1} parent=0
    _
  %s8 = ssub.s32 1, %s6
  %s9 = scalar_select 0, %s8, %s6
  // Predicated region
  $region2: #{simple_q_network.1} parent=0 // pred_check
    _
  $region3: #{simple_q_network.1} parent=0 // pred_check_branch
    %11 = sbr.rel (0) target = $region5
  $region4: #{simple_q_network.1} parent=0 // pred_region
    _
  $region5: #{simple_q_network.1} parent=0 // pred_fallthru
    _
  // Predicated region
  $region6: #{simple_q_network.1} parent=0 // pred_check
    _
  $region7: #{simple_q_network.1} parent=0 // pred_check_branch
    %13 = sbr.rel (0) target = $region9
  $region8: #{simple_q_network.1} parent=0 // pred_region
    _
  $region9: #{simple_q_network.1} parent=0 // pred_fallthru
    _
  // Predicated region
  $region10: #{simple_q_network.1} parent=0 // pred_check
    _
  $region11: #{simple_q_network.1} parent=0 // pred_check_branch
    %15 = sbr.rel (0) target = $region13
  $region12: #{simple_q_network.1} parent=0 // pred_region
    _
  $region13: #{simple_q_network.1} parent=0 // pred_fallthru
    _
  %v16 = vld [vmem:[%s0] sm:$0xff]
  %v17 = vld [vmem:[%s1] sm:$0xf]
  %v18 = vld [vmem:[%s2] sm:$0x1]
  %20 = vset.pattern.permute.xlu0 0
  %21 = vperm.xlu0 %20, %v16
  %v22 = vpop.permute.xlu0 %21
  %v24 = vperm.slane %v17, 0
  %v25 = vmul.f32 %v22, %v24
  %26 = vset.pattern.permute.xlu0 1
  %27 = vperm.xlu0 %26, %v16
  %v28 = vpop.permute.xlu0 %27
  %v30 = vperm.slane %v17, 1
  %v31 = vmul.f32 %v28, %v30
  %v32 = vadd.f32 %v25, %v31
  %33 = vset.pattern.permute.xlu0 2
  %34 = vperm.xlu0 %33, %v16
  %v35 = vpop.permute.xlu0 %34
  %v37 = vperm.slane %v17, 2
  %v38 = vmul.f32 %v35, %v37
  %v39 = vadd.f32 %v32, %v38
  %40 = vset.pattern.permute.xlu0 3
  %41 = vperm.xlu0 %40, %v16
  %v42 = vpop.permute.xlu0 %41
  %v44 = vperm.slane %v17, 3
  %v45 = vmul.f32 %v42, %v44
  %v46 = vadd.f32 %v39, %v45
  %v48 = vperm.slane %v18, 0
  %v50 = vadd.f32 %v46, %v48
  %vm51 = vcmask 15360
  %52 = vst.msk [vmem:[%s3] sm:$0xff] %vm51, %v50
  %v53 = vsel %vm51, %v50, -inf
  %54 = vmax.xlane.f32.xlu0 %v53
  %v55 = vpop.xlane.xlu0 %54
  %v56 = vlaneseq
  %v57 = vand.u32 %v56, 127
  %vm58 = vcmp.ge.f32.partialorder %v50, %v55
  %v59 = vsel %vm58, %v57, 2147483647
  %v60 = vsel %vm51, %v59, 2147483647
  %v61 = vand.u32 %v60, 65535
  %v62 = vshra.s32 %v60, 16
  %v63 = vcvt.s32.f32 %v61
  %v64 = vcvt.s32.f32 %v62
  %65 = vmin.xlane.f32.xlu0 %v64
  %v66 = vpop.xlane.xlu0 %65
  %vm67 = vcmp.eq.f32.partialorder %v64, %v66
  %v68 = vsel %vm67, %v63, inf
  %69 = vmin.xlane.f32.xlu0 %v68
  %v70 = vpop.xlane.xlu0 %69
  %v71 = vcvt.f32.s32 %v70
  %v72 = vcvt.f32.s32 %v66
  %v73 = vshll.u32 %v72, 16
  %v74 = vadd.s32 %v73, %v71
  %vm75 = vcmask 7168
  %76 = vst.msk [vmem:[%s4] sm:$0xff] %vm75, %v74
  // Predicated region
  $region14: #{simple_q_network.1} parent=0 // pred_check
    _
  $region15: #{simple_q_network.1} parent=0 // pred_check_branch
    %78 = sbr.rel (0) target = $region17
  $region16: #{simple_q_network.1} parent=0 // pred_region
    _
  $region17: #{simple_q_network.1} parent=0 // pred_fallthru
    _
  // Predicated region
  $region18: #{simple_q_network.1} parent=0 // pred_check
    _
  $region19: #{simple_q_network.1} parent=0 // pred_check_branch
    %80 = sbr.rel (0) target = $region21
  $region20: #{simple_q_network.1} parent=0 // pred_region
    _
  $region21: #{simple_q_network.1} parent=0 // pred_fallthru
    _
  // Predicated region
  $region22: #{simple_q_network.1} parent=0 // pred_check
    _
  $region23: #{simple_q_network.1} parent=0 // pred_check_branch
    %82 = sbr.rel (0) target = $region25
  $region24: #{simple_q_network.1} parent=0 // pred_region
    _
  $region25: #{simple_q_network.1} parent=0 // pred_fallthru
    _
  // Predicated region
  $region26: #{simple_q_network.1} parent=0 // pred_check
    _
  $region27: #{simple_q_network.1} parent=0 // pred_check_branch
    %84 = sbr.rel (0) target = $region29
  $region28: #{simple_q_network.1} parent=0 // pred_region
    _
  $region29: #{simple_q_network.1} parent=0 // pred_fallthru
    _

</llo_original>
